<compile_context>
chip_gen: v5e
topology: v5e:2x2
jax: 0.10.0
libtpu: 0.0.40
codegen_flags: <defaults>
</compile_context>

<pallas_src>
import functools

import jax
import jax.numpy as jnp
from jax.experimental import pallas as pl
from jax.experimental.pallas import tpu as pltpu

LANES = 128
ROW_UNIT = 8 * LANES  # minimal batch tile: 8 sublanes x 128 lanes
H1, H2 = 10, 10

# Offsets into the packed parameter vector (f32, row-major flattening,
# PyTorch weight layout (out_features, in_features)).
W1_OFF = 0               # (10, 2)
B1_OFF = W1_OFF + 20     # (10,)
W2_OFF = B1_OFF + 10     # (10, 10)
B2_OFF = W2_OFF + 100    # (10,)
W3_OFF = B2_OFF + 10     # (1, 10)
B3_OFF = W3_OFF + 10     # (1,)
N_PARAMS = B3_OFF + 1    # 151
PARAM_PAD = 256


def mlp_kernel(p_ref, x_ref, o_ref):
    # p_ref: (PARAM_PAD,) f32 in SMEM (scalar reads, broadcast on the VPU)
    # x_ref: (2, SUB, 128) f32 in VMEM  -- batch on sublanes/lanes, fully dense
    # o_ref: (SUB, 128) f32 in VMEM     -- lane-dense output, unmasked stores
    x0 = x_ref[0]
    x1 = x_ref[1]

    # Layer 1: Linear(2 -> 10) + ReLU, unrolled VPU ops, bias folded in.
    h1 = []
    for j in range(H1):
        a = p_ref[B1_OFF + j] + p_ref[W1_OFF + 2 * j] * x0
        a = a + p_ref[W1_OFF + 2 * j + 1] * x1
        h1.append(jnp.maximum(a, 0.0))

    # Layer 2: Linear(10 -> 10) + ReLU.
    h2 = []
    for j in range(H2):
        a = p_ref[B2_OFF + j] + p_ref[W2_OFF + H1 * j] * h1[0]
        for i in range(1, H1):
            a = a + p_ref[W2_OFF + H1 * j + i] * h1[i]
        h2.append(jnp.maximum(a, 0.0))

    # Layer 3: Linear(10 -> 1), raw logits (no activation).
    out = p_ref[B3_OFF] + p_ref[W3_OFF] * h2[0]
    for i in range(1, H2):
        out = out + p_ref[W3_OFF + i] * h2[i]

    o_ref[...] = out.astype(o_ref.dtype)


def pack_params(params):
    """Pack (w1,b1,w2,b2,w3,b3) [PyTorch (out,in)/(out,) shapes] into one f32 vector."""
    flat = jnp.concatenate([p.reshape(-1).astype(jnp.float32) for p in params])
    assert flat.shape[0] == N_PARAMS
    return jnp.zeros((PARAM_PAD,), jnp.float32).at[:N_PARAMS].set(flat)


@functools.partial(jax.jit, static_argnames=("max_tile_rows",))
def circle_model_forward(x, packed_params, *, max_tile_rows=32768):
    """x: (N, 2) f32 -> (N, 1) logits, same math as the PyTorch module."""
    assert max_tile_rows % ROW_UNIT == 0
    n = x.shape[0]

    # Adaptive tiling: shrink the tile for tiny batches (avoid padded work),
    # keep it large for big batches (amortize per-step grid overhead).
    n_unit = ((n + ROW_UNIT - 1) // ROW_UNIT) * ROW_UNIT
    tile_rows = min(max_tile_rows, n_unit)
    n_pad = ((n_unit + tile_rows - 1) // tile_rows) * tile_rows
    sub = tile_rows // LANES          # sublanes per grid step
    grid_n = n_pad // tile_rows

    # Layout plumbing (wrapper side): put the batch on the lane/sublane axes.
    x_pad = jnp.pad(x.astype(jnp.float32), ((0, n_pad - n), (0, 0)))
    x_t = x_pad.T.reshape(2, n_pad // LANES, LANES)

    out = pl.pallas_call(
        mlp_kernel,
        out_shape=jax.ShapeDtypeStruct((n_pad // LANES, LANES), jnp.float32),
        grid=(grid_n,),
        in_specs=[
            pl.BlockSpec(memory_space=pltpu.MemorySpace.SMEM),   # packed params (1 DMA)
            pl.BlockSpec((2, sub, LANES), lambda i: (0, i, 0)),  # x batch tile
        ],
        out_specs=pl.BlockSpec((sub, LANES), lambda i: (i, 0)),
        compiler_params=pltpu.CompilerParams(
            dimension_semantics=("parallel",)),
        cost_estimate=pl.CostEstimate(
            flops=n_pad * (2 * 2 * H1 + 2 * H1 * H2 + 2 * H2),
            transcendentals=0,
            bytes_accessed=n_pad * 12 + PARAM_PAD * 4),
    )(packed_params, x_t)

    return out.reshape(n_pad, 1)[:n]


def init_params(key):
    """PyTorch nn.Linear default init: W (out,in), b (out,), U(+-1/sqrt(fan_in))."""
    ks = jax.random.split(key, 6)

    def linear(kw, kb, fan_in, fan_out):
        bound = 1.0 / jnp.sqrt(jnp.float32(fan_in))
        w = jax.random.uniform(kw, (fan_out, fan_in), jnp.float32, -bound, bound)
        b = jax.random.uniform(kb, (fan_out,), jnp.float32, -bound, bound)
        return w, b

    w1, b1 = linear(ks[0], ks[1], 2, 10)
    w2, b2 = linear(ks[2], ks[3], 10, 10)
    w3, b3 = linear(ks[4], ks[5], 10, 1)
    return (w1, b1, w2, b2, w3, b3)


def reference_forward(x, params):
    w1, b1, w2, b2, w3, b3 = params
    h = jnp.maximum(x @ w1.T + b1, 0.0)
    h = jnp.maximum(h @ w2.T + b2, 0.0)
    return h @ w3.T + b3


if __name__ == "__main__":
    key = jax.random.PRNGKey(0)
    k_x, k_p = jax.random.split(key)

    params = init_params(k_p)
    packed = pack_params(params)

    # Small example consistent with the module: batch of 8 points in R^2.
    batch = 8
    x = jax.random.normal(k_x, (batch, 2), dtype=jnp.float32)

    out = jax.block_until_ready(circle_model_forward(x, packed))
    ref = reference_forward(x, params)
    assert out.shape == (batch, 1)
    assert jnp.allclose(out, ref, atol=1e-5, rtol=1e-5)

    # Also exercise the multi-tile grid path (padding + "parallel" batch axis).
    batch2 = 2500
    x2 = jax.random.normal(k_x, (batch2, 2), dtype=jnp.float32)
    out2 = jax.block_until_ready(
        circle_model_forward(x2, packed, max_tile_rows=1024))
    ref2 = reference_forward(x2, params)
    assert out2.shape == (batch2, 1)
    assert jnp.allclose(out2, ref2, atol=1e-5, rtol=1e-5)

    print("KERNEL_OK")
</pallas_src>

<mosaic_0001>
module attributes {stable_mosaic.version = 11 : i64} {
  func.func @mlp_kernel(%arg0: i32, %arg1: memref<256xf32, #tpu.memory_space<smem>>, %arg2: memref<2x8x128xf32, #tpu.memory_space<vmem>>, %arg3: memref<8x128xf32, #tpu.memory_space<vmem>>) attributes {dimension_semantics = [#tpu.dimension_semantics<parallel>], iteration_bounds = array<i64: 1>, scalar_prefetch = 0 : i64, scratch_operands = 0 : i64, tpu.core_type = #tpu.core_type<tc>, window_params = [{transform_indices = @transform_0, window_bounds = array<i64: 256>}, {transform_indices = @transform_1, window_bounds = array<i64: 2, 8, 128>}, {transform_indices = @transform_2, window_bounds = array<i64: 8, 128>}]} {
    %c0 = arith.constant 0 : index
    %c0_0 = arith.constant 0 : index
    %c0_1 = arith.constant 0 : index
    %0 = vector.load %arg2[%c0, %c0_0, %c0_1] : memref<2x8x128xf32, #tpu.memory_space<vmem>>, vector<1x8x128xf32>
    %1 = vector.shape_cast %0 : vector<1x8x128xf32> to vector<8x128xf32>
    %c1 = arith.constant 1 : index
    %c0_2 = arith.constant 0 : index
    %c0_3 = arith.constant 0 : index
    %2 = vector.load %arg2[%c1, %c0_2, %c0_3] : memref<2x8x128xf32, #tpu.memory_space<vmem>>, vector<1x8x128xf32>
    %3 = vector.shape_cast %2 : vector<1x8x128xf32> to vector<8x128xf32>
    %c20 = arith.constant 20 : index
    %4 = memref.load %arg1[%c20] : memref<256xf32, #tpu.memory_space<smem>>
    %c0_4 = arith.constant 0 : index
    %5 = memref.load %arg1[%c0_4] : memref<256xf32, #tpu.memory_space<smem>>
    %6 = vector.broadcast %5 : f32 to vector<8x128xf32>
    %7 = arith.mulf %6, %1 : vector<8x128xf32>
    %8 = vector.broadcast %4 : f32 to vector<8x128xf32>
    %9 = arith.addf %8, %7 : vector<8x128xf32>
    %c1_5 = arith.constant 1 : index
    %10 = memref.load %arg1[%c1_5] : memref<256xf32, #tpu.memory_space<smem>>
    %11 = vector.broadcast %10 : f32 to vector<8x128xf32>
    %12 = arith.mulf %11, %3 : vector<8x128xf32>
    %13 = arith.addf %9, %12 : vector<8x128xf32>
    %cst = arith.constant 0.000000e+00 : f32
    %14 = vector.broadcast %cst : f32 to vector<8x128xf32>
    %15 = arith.maximumf %13, %14 : vector<8x128xf32>
    %c21 = arith.constant 21 : index
    %16 = memref.load %arg1[%c21] : memref<256xf32, #tpu.memory_space<smem>>
    %c2 = arith.constant 2 : index
    %17 = memref.load %arg1[%c2] : memref<256xf32, #tpu.memory_space<smem>>
    %18 = vector.broadcast %17 : f32 to vector<8x128xf32>
    %19 = arith.mulf %18, %1 : vector<8x128xf32>
    %20 = vector.broadcast %16 : f32 to vector<8x128xf32>
    %21 = arith.addf %20, %19 : vector<8x128xf32>
    %c3 = arith.constant 3 : index
    %22 = memref.load %arg1[%c3] : memref<256xf32, #tpu.memory_space<smem>>
    %23 = vector.broadcast %22 : f32 to vector<8x128xf32>
    %24 = arith.mulf %23, %3 : vector<8x128xf32>
    %25 = arith.addf %21, %24 : vector<8x128xf32>
    %cst_6 = arith.constant 0.000000e+00 : f32
    %26 = vector.broadcast %cst_6 : f32 to vector<8x128xf32>
    %27 = arith.maximumf %25, %26 : vector<8x128xf32>
    %c22 = arith.constant 22 : index
    %28 = memref.load %arg1[%c22] : memref<256xf32, #tpu.memory_space<smem>>
    %c4 = arith.constant 4 : index
    %29 = memref.load %arg1[%c4] : memref<256xf32, #tpu.memory_space<smem>>
    %30 = vector.broadcast %29 : f32 to vector<8x128xf32>
    %31 = arith.mulf %30, %1 : vector<8x128xf32>
    %32 = vector.broadcast %28 : f32 to vector<8x128xf32>
    %33 = arith.addf %32, %31 : vector<8x128xf32>
    %c5 = arith.constant 5 : index
    %34 = memref.load %arg1[%c5] : memref<256xf32, #tpu.memory_space<smem>>
    %35 = vector.broadcast %34 : f32 to vector<8x128xf32>
    %36 = arith.mulf %35, %3 : vector<8x128xf32>
    %37 = arith.addf %33, %36 : vector<8x128xf32>
    %cst_7 = arith.constant 0.000000e+00 : f32
    %38 = vector.broadcast %cst_7 : f32 to vector<8x128xf32>
    %39 = arith.maximumf %37, %38 : vector<8x128xf32>
    %c23 = arith.constant 23 : index
    %40 = memref.load %arg1[%c23] : memref<256xf32, #tpu.memory_space<smem>>
    %c6 = arith.constant 6 : index
    %41 = memref.load %arg1[%c6] : memref<256xf32, #tpu.memory_space<smem>>
    %42 = vector.broadcast %41 : f32 to vector<8x128xf32>
    %43 = arith.mulf %42, %1 : vector<8x128xf32>
    %44 = vector.broadcast %40 : f32 to vector<8x128xf32>
    %45 = arith.addf %44, %43 : vector<8x128xf32>
    %c7 = arith.constant 7 : index
    %46 = memref.load %arg1[%c7] : memref<256xf32, #tpu.memory_space<smem>>
    %47 = vector.broadcast %46 : f32 to vector<8x128xf32>
    %48 = arith.mulf %47, %3 : vector<8x128xf32>
    %49 = arith.addf %45, %48 : vector<8x128xf32>
    %cst_8 = arith.constant 0.000000e+00 : f32
    %50 = vector.broadcast %cst_8 : f32 to vector<8x128xf32>
    %51 = arith.maximumf %49, %50 : vector<8x128xf32>
    %c24 = arith.constant 24 : index
    %52 = memref.load %arg1[%c24] : memref<256xf32, #tpu.memory_space<smem>>
    %c8 = arith.constant 8 : index
    %53 = memref.load %arg1[%c8] : memref<256xf32, #tpu.memory_space<smem>>
    %54 = vector.broadcast %53 : f32 to vector<8x128xf32>
    %55 = arith.mulf %54, %1 : vector<8x128xf32>
    %56 = vector.broadcast %52 : f32 to vector<8x128xf32>
    %57 = arith.addf %56, %55 : vector<8x128xf32>
    %c9 = arith.constant 9 : index
    %58 = memref.load %arg1[%c9] : memref<256xf32, #tpu.memory_space<smem>>
    %59 = vector.broadcast %58 : f32 to vector<8x128xf32>
    %60 = arith.mulf %59, %3 : vector<8x128xf32>
    %61 = arith.addf %57, %60 : vector<8x128xf32>
    %cst_9 = arith.constant 0.000000e+00 : f32
    %62 = vector.broadcast %cst_9 : f32 to vector<8x128xf32>
    %63 = arith.maximumf %61, %62 : vector<8x128xf32>
    %c25 = arith.constant 25 : index
    %64 = memref.load %arg1[%c25] : memref<256xf32, #tpu.memory_space<smem>>
    %c10 = arith.constant 10 : index
    %65 = memref.load %arg1[%c10] : memref<256xf32, #tpu.memory_space<smem>>
    %66 = vector.broadcast %65 : f32 to vector<8x128xf32>
    %67 = arith.mulf %66, %1 : vector<8x128xf32>
    %68 = vector.broadcast %64 : f32 to vector<8x128xf32>
    %69 = arith.addf %68, %67 : vector<8x128xf32>
    %c11 = arith.constant 11 : index
    %70 = memref.load %arg1[%c11] : memref<256xf32, #tpu.memory_space<smem>>
    %71 = vector.broadcast %70 : f32 to vector<8x128xf32>
    %72 = arith.mulf %71, %3 : vector<8x128xf32>
    %73 = arith.addf %69, %72 : vector<8x128xf32>
    %cst_10 = arith.constant 0.000000e+00 : f32
    %74 = vector.broadcast %cst_10 : f32 to vector<8x128xf32>
    %75 = arith.maximumf %73, %74 : vector<8x128xf32>
    %c26 = arith.constant 26 : index
    %76 = memref.load %arg1[%c26] : memref<256xf32, #tpu.memory_space<smem>>
    %c12 = arith.constant 12 : index
    %77 = memref.load %arg1[%c12] : memref<256xf32, #tpu.memory_space<smem>>
    %78 = vector.broadcast %77 : f32 to vector<8x128xf32>
    %79 = arith.mulf %78, %1 : vector<8x128xf32>
    %80 = vector.broadcast %76 : f32 to vector<8x128xf32>
    %81 = arith.addf %80, %79 : vector<8x128xf32>
    %c13 = arith.constant 13 : index
    %82 = memref.load %arg1[%c13] : memref<256xf32, #tpu.memory_space<smem>>
    %83 = vector.broadcast %82 : f32 to vector<8x128xf32>
    %84 = arith.mulf %83, %3 : vector<8x128xf32>
    %85 = arith.addf %81, %84 : vector<8x128xf32>
    %cst_11 = arith.constant 0.000000e+00 : f32
    %86 = vector.broadcast %cst_11 : f32 to vector<8x128xf32>
    %87 = arith.maximumf %85, %86 : vector<8x128xf32>
    %c27 = arith.constant 27 : index
    %88 = memref.load %arg1[%c27] : memref<256xf32, #tpu.memory_space<smem>>
    %c14 = arith.constant 14 : index
    %89 = memref.load %arg1[%c14] : memref<256xf32, #tpu.memory_space<smem>>
    %90 = vector.broadcast %89 : f32 to vector<8x128xf32>
    %91 = arith.mulf %90, %1 : vector<8x128xf32>
    %92 = vector.broadcast %88 : f32 to vector<8x128xf32>
    %93 = arith.addf %92, %91 : vector<8x128xf32>
    %c15 = arith.constant 15 : index
    %94 = memref.load %arg1[%c15] : memref<256xf32, #tpu.memory_space<smem>>
    %95 = vector.broadcast %94 : f32 to vector<8x128xf32>
    %96 = arith.mulf %95, %3 : vector<8x128xf32>
    %97 = arith.addf %93, %96 : vector<8x128xf32>
    %cst_12 = arith.constant 0.000000e+00 : f32
    %98 = vector.broadcast %cst_12 : f32 to vector<8x128xf32>
    %99 = arith.maximumf %97, %98 : vector<8x128xf32>
    %c28 = arith.constant 28 : index
    %100 = memref.load %arg1[%c28] : memref<256xf32, #tpu.memory_space<smem>>
    %c16 = arith.constant 16 : index
    %101 = memref.load %arg1[%c16] : memref<256xf32, #tpu.memory_space<smem>>
    %102 = vector.broadcast %101 : f32 to vector<8x128xf32>
    %103 = arith.mulf %102, %1 : vector<8x128xf32>
    %104 = vector.broadcast %100 : f32 to vector<8x128xf32>
    %105 = arith.addf %104, %103 : vector<8x128xf32>
    %c17 = arith.constant 17 : index
    %106 = memref.load %arg1[%c17] : memref<256xf32, #tpu.memory_space<smem>>
    %107 = vector.broadcast %106 : f32 to vector<8x128xf32>
    %108 = arith.mulf %107, %3 : vector<8x128xf32>
    %109 = arith.addf %105, %108 : vector<8x128xf32>
    %cst_13 = arith.constant 0.000000e+00 : f32
    %110 = vector.broadcast %cst_13 : f32 to vector<8x128xf32>
    %111 = arith.maximumf %109, %110 : vector<8x128xf32>
    %c29 = arith.constant 29 : index
    %112 = memref.load %arg1[%c29] : memref<256xf32, #tpu.memory_space<smem>>
    %c18 = arith.constant 18 : index
    %113 = memref.load %arg1[%c18] : memref<256xf32, #tpu.memory_space<smem>>
    %114 = vector.broadcast %113 : f32 to vector<8x128xf32>
    %115 = arith.mulf %114, %1 : vector<8x128xf32>
    %116 = vector.broadcast %112 : f32 to vector<8x128xf32>
    %117 = arith.addf %116, %115 : vector<8x128xf32>
    %c19 = arith.constant 19 : index
    %118 = memref.load %arg1[%c19] : memref<256xf32, #tpu.memory_space<smem>>
    %119 = vector.broadcast %118 : f32 to vector<8x128xf32>
    %120 = arith.mulf %119, %3 : vector<8x128xf32>
    %121 = arith.addf %117, %120 : vector<8x128xf32>
    %cst_14 = arith.constant 0.000000e+00 : f32
    %122 = vector.broadcast %cst_14 : f32 to vector<8x128xf32>
    %123 = arith.maximumf %121, %122 : vector<8x128xf32>
    %c130 = arith.constant 130 : index
    %124 = memref.load %arg1[%c130] : memref<256xf32, #tpu.memory_space<smem>>
    %c30 = arith.constant 30 : index
    %125 = memref.load %arg1[%c30] : memref<256xf32, #tpu.memory_space<smem>>
    %126 = vector.broadcast %125 : f32 to vector<8x128xf32>
    %127 = arith.mulf %126, %15 : vector<8x128xf32>
    %128 = vector.broadcast %124 : f32 to vector<8x128xf32>
    %129 = arith.addf %128, %127 : vector<8x128xf32>
    %c31 = arith.constant 31 : index
    %130 = memref.load %arg1[%c31] : memref<256xf32, #tpu.memory_space<smem>>
    %131 = vector.broadcast %130 : f32 to vector<8x128xf32>
    %132 = arith.mulf %131, %27 : vector<8x128xf32>
    %133 = arith.addf %129, %132 : vector<8x128xf32>
    %c32 = arith.constant 32 : index
    %134 = memref.load %arg1[%c32] : memref<256xf32, #tpu.memory_space<smem>>
    %135 = vector.broadcast %134 : f32 to vector<8x128xf32>
    %136 = arith.mulf %135, %39 : vector<8x128xf32>
    %137 = arith.addf %133, %136 : vector<8x128xf32>
    %c33 = arith.constant 33 : index
    %138 = memref.load %arg1[%c33] : memref<256xf32, #tpu.memory_space<smem>>
    %139 = vector.broadcast %138 : f32 to vector<8x128xf32>
    %140 = arith.mulf %139, %51 : vector<8x128xf32>
    %141 = arith.addf %137, %140 : vector<8x128xf32>
    %c34 = arith.constant 34 : index
    %142 = memref.load %arg1[%c34] : memref<256xf32, #tpu.memory_space<smem>>
    %143 = vector.broadcast %142 : f32 to vector<8x128xf32>
    %144 = arith.mulf %143, %63 : vector<8x128xf32>
    %145 = arith.addf %141, %144 : vector<8x128xf32>
    %c35 = arith.constant 35 : index
    %146 = memref.load %arg1[%c35] : memref<256xf32, #tpu.memory_space<smem>>
    %147 = vector.broadcast %146 : f32 to vector<8x128xf32>
    %148 = arith.mulf %147, %75 : vector<8x128xf32>
    %149 = arith.addf %145, %148 : vector<8x128xf32>
    %c36 = arith.constant 36 : index
    %150 = memref.load %arg1[%c36] : memref<256xf32, #tpu.memory_space<smem>>
    %151 = vector.broadcast %150 : f32 to vector<8x128xf32>
    %152 = arith.mulf %151, %87 : vector<8x128xf32>
    %153 = arith.addf %149, %152 : vector<8x128xf32>
    %c37 = arith.constant 37 : index
    %154 = memref.load %arg1[%c37] : memref<256xf32, #tpu.memory_space<smem>>
    %155 = vector.broadcast %154 : f32 to vector<8x128xf32>
    %156 = arith.mulf %155, %99 : vector<8x128xf32>
    %157 = arith.addf %153, %156 : vector<8x128xf32>
    %c38 = arith.constant 38 : index
    %158 = memref.load %arg1[%c38] : memref<256xf32, #tpu.memory_space<smem>>
    %159 = vector.broadcast %158 : f32 to vector<8x128xf32>
    %160 = arith.mulf %159, %111 : vector<8x128xf32>
    %161 = arith.addf %157, %160 : vector<8x128xf32>
    %c39 = arith.constant 39 : index
    %162 = memref.load %arg1[%c39] : memref<256xf32, #tpu.memory_space<smem>>
    %163 = vector.broadcast %162 : f32 to vector<8x128xf32>
    %164 = arith.mulf %163, %123 : vector<8x128xf32>
    %165 = arith.addf %161, %164 : vector<8x128xf32>
    %cst_15 = arith.constant 0.000000e+00 : f32
    %166 = vector.broadcast %cst_15 : f32 to vector<8x128xf32>
    %167 = arith.maximumf %165, %166 : vector<8x128xf32>
    %c131 = arith.constant 131 : index
    %168 = memref.load %arg1[%c131] : memref<256xf32, #tpu.memory_space<smem>>
    %c40 = arith.constant 40 : index
    %169 = memref.load %arg1[%c40] : memref<256xf32, #tpu.memory_space<smem>>
    %170 = vector.broadcast %169 : f32 to vector<8x128xf32>
    %171 = arith.mulf %170, %15 : vector<8x128xf32>
    %172 = vector.broadcast %168 : f32 to vector<8x128xf32>
    %173 = arith.addf %172, %171 : vector<8x128xf32>
    %c41 = arith.constant 41 : index
    %174 = memref.load %arg1[%c41] : memref<256xf32, #tpu.memory_space<smem>>
    %175 = vector.broadcast %174 : f32 to vector<8x128xf32>
    %176 = arith.mulf %175, %27 : vector<8x128xf32>
    %177 = arith.addf %173, %176 : vector<8x128xf32>
    %c42 = arith.constant 42 : index
    %178 = memref.load %arg1[%c42] : memref<256xf32, #tpu.memory_space<smem>>
    %179 = vector.broadcast %178 : f32 to vector<8x128xf32>
    %180 = arith.mulf %179, %39 : vector<8x128xf32>
    %181 = arith.addf %177, %180 : vector<8x128xf32>
    %c43 = arith.constant 43 : index
    %182 = memref.load %arg1[%c43] : memref<256xf32, #tpu.memory_space<smem>>
    %183 = vector.broadcast %182 : f32 to vector<8x128xf32>
    %184 = arith.mulf %183, %51 : vector<8x128xf32>
    %185 = arith.addf %181, %184 : vector<8x128xf32>
    %c44 = arith.constant 44 : index
    %186 = memref.load %arg1[%c44] : memref<256xf32, #tpu.memory_space<smem>>
    %187 = vector.broadcast %186 : f32 to vector<8x128xf32>
    %188 = arith.mulf %187, %63 : vector<8x128xf32>
    %189 = arith.addf %185, %188 : vector<8x128xf32>
    %c45 = arith.constant 45 : index
    %190 = memref.load %arg1[%c45] : memref<256xf32, #tpu.memory_space<smem>>
    %191 = vector.broadcast %190 : f32 to vector<8x128xf32>
    %192 = arith.mulf %191, %75 : vector<8x128xf32>
    %193 = arith.addf %189, %192 : vector<8x128xf32>
    %c46 = arith.constant 46 : index
    %194 = memref.load %arg1[%c46] : memref<256xf32, #tpu.memory_space<smem>>
    %195 = vector.broadcast %194 : f32 to vector<8x128xf32>
    %196 = arith.mulf %195, %87 : vector<8x128xf32>
    %197 = arith.addf %193, %196 : vector<8x128xf32>
    %c47 = arith.constant 47 : index
    %198 = memref.load %arg1[%c47] : memref<256xf32, #tpu.memory_space<smem>>
    %199 = vector.broadcast %198 : f32 to vector<8x128xf32>
    %200 = arith.mulf %199, %99 : vector<8x128xf32>
    %201 = arith.addf %197, %200 : vector<8x128xf32>
    %c48 = arith.constant 48 : index
    %202 = memref.load %arg1[%c48] : memref<256xf32, #tpu.memory_space<smem>>
    %203 = vector.broadcast %202 : f32 to vector<8x128xf32>
    %204 = arith.mulf %203, %111 : vector<8x128xf32>
    %205 = arith.addf %201, %204 : vector<8x128xf32>
    %c49 = arith.constant 49 : index
    %206 = memref.load %arg1[%c49] : memref<256xf32, #tpu.memory_space<smem>>
    %207 = vector.broadcast %206 : f32 to vector<8x128xf32>
    %208 = arith.mulf %207, %123 : vector<8x128xf32>
    %209 = arith.addf %205, %208 : vector<8x128xf32>
    %cst_16 = arith.constant 0.000000e+00 : f32
    %210 = vector.broadcast %cst_16 : f32 to vector<8x128xf32>
    %211 = arith.maximumf %209, %210 : vector<8x128xf32>
    %c132 = arith.constant 132 : index
    %212 = memref.load %arg1[%c132] : memref<256xf32, #tpu.memory_space<smem>>
    %c50 = arith.constant 50 : index
    %213 = memref.load %arg1[%c50] : memref<256xf32, #tpu.memory_space<smem>>
    %214 = vector.broadcast %213 : f32 to vector<8x128xf32>
    %215 = arith.mulf %214, %15 : vector<8x128xf32>
    %216 = vector.broadcast %212 : f32 to vector<8x128xf32>
    %217 = arith.addf %216, %215 : vector<8x128xf32>
    %c51 = arith.constant 51 : index
    %218 = memref.load %arg1[%c51] : memref<256xf32, #tpu.memory_space<smem>>
    %219 = vector.broadcast %218 : f32 to vector<8x128xf32>
    %220 = arith.mulf %219, %27 : vector<8x128xf32>
    %221 = arith.addf %217, %220 : vector<8x128xf32>
    %c52 = arith.constant 52 : index
    %222 = memref.load %arg1[%c52] : memref<256xf32, #tpu.memory_space<smem>>
    %223 = vector.broadcast %222 : f32 to vector<8x128xf32>
    %224 = arith.mulf %223, %39 : vector<8x128xf32>
    %225 = arith.addf %221, %224 : vector<8x128xf32>
    %c53 = arith.constant 53 : index
    %226 = memref.load %arg1[%c53] : memref<256xf32, #tpu.memory_space<smem>>
    %227 = vector.broadcast %226 : f32 to vector<8x128xf32>
    %228 = arith.mulf %227, %51 : vector<8x128xf32>
    %229 = arith.addf %225, %228 : vector<8x128xf32>
    %c54 = arith.constant 54 : index
    %230 = memref.load %arg1[%c54] : memref<256xf32, #tpu.memory_space<smem>>
    %231 = vector.broadcast %230 : f32 to vector<8x128xf32>
    %232 = arith.mulf %231, %63 : vector<8x128xf32>
    %233 = arith.addf %229, %232 : vector<8x128xf32>
    %c55 = arith.constant 55 : index
    %234 = memref.load %arg1[%c55] : memref<256xf32, #tpu.memory_space<smem>>
    %235 = vector.broadcast %234 : f32 to vector<8x128xf32>
    %236 = arith.mulf %235, %75 : vector<8x128xf32>
    %237 = arith.addf %233, %236 : vector<8x128xf32>
    %c56 = arith.constant 56 : index
    %238 = memref.load %arg1[%c56] : memref<256xf32, #tpu.memory_space<smem>>
    %239 = vector.broadcast %238 : f32 to vector<8x128xf32>
    %240 = arith.mulf %239, %87 : vector<8x128xf32>
    %241 = arith.addf %237, %240 : vector<8x128xf32>
    %c57 = arith.constant 57 : index
    %242 = memref.load %arg1[%c57] : memref<256xf32, #tpu.memory_space<smem>>
    %243 = vector.broadcast %242 : f32 to vector<8x128xf32>
    %244 = arith.mulf %243, %99 : vector<8x128xf32>
    %245 = arith.addf %241, %244 : vector<8x128xf32>
    %c58 = arith.constant 58 : index
    %246 = memref.load %arg1[%c58] : memref<256xf32, #tpu.memory_space<smem>>
    %247 = vector.broadcast %246 : f32 to vector<8x128xf32>
    %248 = arith.mulf %247, %111 : vector<8x128xf32>
    %249 = arith.addf %245, %248 : vector<8x128xf32>
    %c59 = arith.constant 59 : index
    %250 = memref.load %arg1[%c59] : memref<256xf32, #tpu.memory_space<smem>>
    %251 = vector.broadcast %250 : f32 to vector<8x128xf32>
    %252 = arith.mulf %251, %123 : vector<8x128xf32>
    %253 = arith.addf %249, %252 : vector<8x128xf32>
    %cst_17 = arith.constant 0.000000e+00 : f32
    %254 = vector.broadcast %cst_17 : f32 to vector<8x128xf32>
    %255 = arith.maximumf %253, %254 : vector<8x128xf32>
    %c133 = arith.constant 133 : index
    %256 = memref.load %arg1[%c133] : memref<256xf32, #tpu.memory_space<smem>>
    %c60 = arith.constant 60 : index
    %257 = memref.load %arg1[%c60] : memref<256xf32, #tpu.memory_space<smem>>
    %258 = vector.broadcast %257 : f32 to vector<8x128xf32>
    %259 = arith.mulf %258, %15 : vector<8x128xf32>
    %260 = vector.broadcast %256 : f32 to vector<8x128xf32>
    %261 = arith.addf %260, %259 : vector<8x128xf32>
    %c61 = arith.constant 61 : index
    %262 = memref.load %arg1[%c61] : memref<256xf32, #tpu.memory_space<smem>>
    %263 = vector.broadcast %262 : f32 to vector<8x128xf32>
    %264 = arith.mulf %263, %27 : vector<8x128xf32>
    %265 = arith.addf %261, %264 : vector<8x128xf32>
    %c62 = arith.constant 62 : index
    %266 = memref.load %arg1[%c62] : memref<256xf32, #tpu.memory_space<smem>>
    %267 = vector.broadcast %266 : f32 to vector<8x128xf32>
    %268 = arith.mulf %267, %39 : vector<8x128xf32>
    %269 = arith.addf %265, %268 : vector<8x128xf32>
    %c63 = arith.constant 63 : index
    %270 = memref.load %arg1[%c63] : memref<256xf32, #tpu.memory_space<smem>>
    %271 = vector.broadcast %270 : f32 to vector<8x128xf32>
    %272 = arith.mulf %271, %51 : vector<8x128xf32>
    %273 = arith.addf %269, %272 : vector<8x128xf32>
    %c64 = arith.constant 64 : index
    %274 = memref.load %arg1[%c64] : memref<256xf32, #tpu.memory_space<smem>>
    %275 = vector.broadcast %274 : f32 to vector<8x128xf32>
    %276 = arith.mulf %275, %63 : vector<8x128xf32>
    %277 = arith.addf %273, %276 : vector<8x128xf32>
    %c65 = arith.constant 65 : index
    %278 = memref.load %arg1[%c65] : memref<256xf32, #tpu.memory_space<smem>>
    %279 = vector.broadcast %278 : f32 to vector<8x128xf32>
    %280 = arith.mulf %279, %75 : vector<8x128xf32>
    %281 = arith.addf %277, %280 : vector<8x128xf32>
    %c66 = arith.constant 66 : index
    %282 = memref.load %arg1[%c66] : memref<256xf32, #tpu.memory_space<smem>>
    %283 = vector.broadcast %282 : f32 to vector<8x128xf32>
    %284 = arith.mulf %283, %87 : vector<8x128xf32>
    %285 = arith.addf %281, %284 : vector<8x128xf32>
    %c67 = arith.constant 67 : index
    %286 = memref.load %arg1[%c67] : memref<256xf32, #tpu.memory_space<smem>>
    %287 = vector.broadcast %286 : f32 to vector<8x128xf32>
    %288 = arith.mulf %287, %99 : vector<8x128xf32>
    %289 = arith.addf %285, %288 : vector<8x128xf32>
    %c68 = arith.constant 68 : index
    %290 = memref.load %arg1[%c68] : memref<256xf32, #tpu.memory_space<smem>>
    %291 = vector.broadcast %290 : f32 to vector<8x128xf32>
    %292 = arith.mulf %291, %111 : vector<8x128xf32>
    %293 = arith.addf %289, %292 : vector<8x128xf32>
    %c69 = arith.constant 69 : index
    %294 = memref.load %arg1[%c69] : memref<256xf32, #tpu.memory_space<smem>>
    %295 = vector.broadcast %294 : f32 to vector<8x128xf32>
    %296 = arith.mulf %295, %123 : vector<8x128xf32>
    %297 = arith.addf %293, %296 : vector<8x128xf32>
    %cst_18 = arith.constant 0.000000e+00 : f32
    %298 = vector.broadcast %cst_18 : f32 to vector<8x128xf32>
    %299 = arith.maximumf %297, %298 : vector<8x128xf32>
    %c134 = arith.constant 134 : index
    %300 = memref.load %arg1[%c134] : memref<256xf32, #tpu.memory_space<smem>>
    %c70 = arith.constant 70 : index
    %301 = memref.load %arg1[%c70] : memref<256xf32, #tpu.memory_space<smem>>
    %302 = vector.broadcast %301 : f32 to vector<8x128xf32>
    %303 = arith.mulf %302, %15 : vector<8x128xf32>
    %304 = vector.broadcast %300 : f32 to vector<8x128xf32>
    %305 = arith.addf %304, %303 : vector<8x128xf32>
    %c71 = arith.constant 71 : index
    %306 = memref.load %arg1[%c71] : memref<256xf32, #tpu.memory_space<smem>>
    %307 = vector.broadcast %306 : f32 to vector<8x128xf32>
    %308 = arith.mulf %307, %27 : vector<8x128xf32>
    %309 = arith.addf %305, %308 : vector<8x128xf32>
    %c72 = arith.constant 72 : index
    %310 = memref.load %arg1[%c72] : memref<256xf32, #tpu.memory_space<smem>>
    %311 = vector.broadcast %310 : f32 to vector<8x128xf32>
    %312 = arith.mulf %311, %39 : vector<8x128xf32>
    %313 = arith.addf %309, %312 : vector<8x128xf32>
    %c73 = arith.constant 73 : index
    %314 = memref.load %arg1[%c73] : memref<256xf32, #tpu.memory_space<smem>>
    %315 = vector.broadcast %314 : f32 to vector<8x128xf32>
    %316 = arith.mulf %315, %51 : vector<8x128xf32>
    %317 = arith.addf %313, %316 : vector<8x128xf32>
    %c74 = arith.constant 74 : index
    %318 = memref.load %arg1[%c74] : memref<256xf32, #tpu.memory_space<smem>>
    %319 = vector.broadcast %318 : f32 to vector<8x128xf32>
    %320 = arith.mulf %319, %63 : vector<8x128xf32>
    %321 = arith.addf %317, %320 : vector<8x128xf32>
    %c75 = arith.constant 75 : index
    %322 = memref.load %arg1[%c75] : memref<256xf32, #tpu.memory_space<smem>>
    %323 = vector.broadcast %322 : f32 to vector<8x128xf32>
    %324 = arith.mulf %323, %75 : vector<8x128xf32>
    %325 = arith.addf %321, %324 : vector<8x128xf32>
    %c76 = arith.constant 76 : index
    %326 = memref.load %arg1[%c76] : memref<256xf32, #tpu.memory_space<smem>>
    %327 = vector.broadcast %326 : f32 to vector<8x128xf32>
    %328 = arith.mulf %327, %87 : vector<8x128xf32>
    %329 = arith.addf %325, %328 : vector<8x128xf32>
    %c77 = arith.constant 77 : index
    %330 = memref.load %arg1[%c77] : memref<256xf32, #tpu.memory_space<smem>>
    %331 = vector.broadcast %330 : f32 to vector<8x128xf32>
    %332 = arith.mulf %331, %99 : vector<8x128xf32>
    %333 = arith.addf %329, %332 : vector<8x128xf32>
    %c78 = arith.constant 78 : index
    %334 = memref.load %arg1[%c78] : memref<256xf32, #tpu.memory_space<smem>>
    %335 = vector.broadcast %334 : f32 to vector<8x128xf32>
    %336 = arith.mulf %335, %111 : vector<8x128xf32>
    %337 = arith.addf %333, %336 : vector<8x128xf32>
    %c79 = arith.constant 79 : index
    %338 = memref.load %arg1[%c79] : memref<256xf32, #tpu.memory_space<smem>>
    %339 = vector.broadcast %338 : f32 to vector<8x128xf32>
    %340 = arith.mulf %339, %123 : vector<8x128xf32>
    %341 = arith.addf %337, %340 : vector<8x128xf32>
    %cst_19 = arith.constant 0.000000e+00 : f32
    %342 = vector.broadcast %cst_19 : f32 to vector<8x128xf32>
    %343 = arith.maximumf %341, %342 : vector<8x128xf32>
    %c135 = arith.constant 135 : index
    %344 = memref.load %arg1[%c135] : memref<256xf32, #tpu.memory_space<smem>>
    %c80 = arith.constant 80 : index
    %345 = memref.load %arg1[%c80] : memref<256xf32, #tpu.memory_space<smem>>
    %346 = vector.broadcast %345 : f32 to vector<8x128xf32>
    %347 = arith.mulf %346, %15 : vector<8x128xf32>
    %348 = vector.broadcast %344 : f32 to vector<8x128xf32>
    %349 = arith.addf %348, %347 : vector<8x128xf32>
    %c81 = arith.constant 81 : index
    %350 = memref.load %arg1[%c81] : memref<256xf32, #tpu.memory_space<smem>>
    %351 = vector.broadcast %350 : f32 to vector<8x128xf32>
    %352 = arith.mulf %351, %27 : vector<8x128xf32>
    %353 = arith.addf %349, %352 : vector<8x128xf32>
    %c82 = arith.constant 82 : index
    %354 = memref.load %arg1[%c82] : memref<256xf32, #tpu.memory_space<smem>>
    %355 = vector.broadcast %354 : f32 to vector<8x128xf32>
    %356 = arith.mulf %355, %39 : vector<8x128xf32>
    %357 = arith.addf %353, %356 : vector<8x128xf32>
    %c83 = arith.constant 83 : index
    %358 = memref.load %arg1[%c83] : memref<256xf32, #tpu.memory_space<smem>>
    %359 = vector.broadcast %358 : f32 to vector<8x128xf32>
    %360 = arith.mulf %359, %51 : vector<8x128xf32>
    %361 = arith.addf %357, %360 : vector<8x128xf32>
    %c84 = arith.constant 84 : index
    %362 = memref.load %arg1[%c84] : memref<256xf32, #tpu.memory_space<smem>>
    %363 = vector.broadcast %362 : f32 to vector<8x128xf32>
    %364 = arith.mulf %363, %63 : vector<8x128xf32>
    %365 = arith.addf %361, %364 : vector<8x128xf32>
    %c85 = arith.constant 85 : index
    %366 = memref.load %arg1[%c85] : memref<256xf32, #tpu.memory_space<smem>>
    %367 = vector.broadcast %366 : f32 to vector<8x128xf32>
    %368 = arith.mulf %367, %75 : vector<8x128xf32>
    %369 = arith.addf %365, %368 : vector<8x128xf32>
    %c86 = arith.constant 86 : index
    %370 = memref.load %arg1[%c86] : memref<256xf32, #tpu.memory_space<smem>>
    %371 = vector.broadcast %370 : f32 to vector<8x128xf32>
    %372 = arith.mulf %371, %87 : vector<8x128xf32>
    %373 = arith.addf %369, %372 : vector<8x128xf32>
    %c87 = arith.constant 87 : index
    %374 = memref.load %arg1[%c87] : memref<256xf32, #tpu.memory_space<smem>>
    %375 = vector.broadcast %374 : f32 to vector<8x128xf32>
    %376 = arith.mulf %375, %99 : vector<8x128xf32>
    %377 = arith.addf %373, %376 : vector<8x128xf32>
    %c88 = arith.constant 88 : index
    %378 = memref.load %arg1[%c88] : memref<256xf32, #tpu.memory_space<smem>>
    %379 = vector.broadcast %378 : f32 to vector<8x128xf32>
    %380 = arith.mulf %379, %111 : vector<8x128xf32>
    %381 = arith.addf %377, %380 : vector<8x128xf32>
    %c89 = arith.constant 89 : index
    %382 = memref.load %arg1[%c89] : memref<256xf32, #tpu.memory_space<smem>>
    %383 = vector.broadcast %382 : f32 to vector<8x128xf32>
    %384 = arith.mulf %383, %123 : vector<8x128xf32>
    %385 = arith.addf %381, %384 : vector<8x128xf32>
    %cst_20 = arith.constant 0.000000e+00 : f32
    %386 = vector.broadcast %cst_20 : f32 to vector<8x128xf32>
    %387 = arith.maximumf %385, %386 : vector<8x128xf32>
    %c136 = arith.constant 136 : index
    %388 = memref.load %arg1[%c136] : memref<256xf32, #tpu.memory_space<smem>>
    %c90 = arith.constant 90 : index
    %389 = memref.load %arg1[%c90] : memref<256xf32, #tpu.memory_space<smem>>
    %390 = vector.broadcast %389 : f32 to vector<8x128xf32>
    %391 = arith.mulf %390, %15 : vector<8x128xf32>
    %392 = vector.broadcast %388 : f32 to vector<8x128xf32>
    %393 = arith.addf %392, %391 : vector<8x128xf32>
    %c91 = arith.constant 91 : index
    %394 = memref.load %arg1[%c91] : memref<256xf32, #tpu.memory_space<smem>>
    %395 = vector.broadcast %394 : f32 to vector<8x128xf32>
    %396 = arith.mulf %395, %27 : vector<8x128xf32>
    %397 = arith.addf %393, %396 : vector<8x128xf32>
    %c92 = arith.constant 92 : index
    %398 = memref.load %arg1[%c92] : memref<256xf32, #tpu.memory_space<smem>>
    %399 = vector.broadcast %398 : f32 to vector<8x128xf32>
    %400 = arith.mulf %399, %39 : vector<8x128xf32>
    %401 = arith.addf %397, %400 : vector<8x128xf32>
    %c93 = arith.constant 93 : index
    %402 = memref.load %arg1[%c93] : memref<256xf32, #tpu.memory_space<smem>>
    %403 = vector.broadcast %402 : f32 to vector<8x128xf32>
    %404 = arith.mulf %403, %51 : vector<8x128xf32>
    %405 = arith.addf %401, %404 : vector<8x128xf32>
    %c94 = arith.constant 94 : index
    %406 = memref.load %arg1[%c94] : memref<256xf32, #tpu.memory_space<smem>>
    %407 = vector.broadcast %406 : f32 to vector<8x128xf32>
    %408 = arith.mulf %407, %63 : vector<8x128xf32>
    %409 = arith.addf %405, %408 : vector<8x128xf32>
    %c95 = arith.constant 95 : index
    %410 = memref.load %arg1[%c95] : memref<256xf32, #tpu.memory_space<smem>>
    %411 = vector.broadcast %410 : f32 to vector<8x128xf32>
    %412 = arith.mulf %411, %75 : vector<8x128xf32>
    %413 = arith.addf %409, %412 : vector<8x128xf32>
    %c96 = arith.constant 96 : index
    %414 = memref.load %arg1[%c96] : memref<256xf32, #tpu.memory_space<smem>>
    %415 = vector.broadcast %414 : f32 to vector<8x128xf32>
    %416 = arith.mulf %415, %87 : vector<8x128xf32>
    %417 = arith.addf %413, %416 : vector<8x128xf32>
    %c97 = arith.constant 97 : index
    %418 = memref.load %arg1[%c97] : memref<256xf32, #tpu.memory_space<smem>>
    %419 = vector.broadcast %418 : f32 to vector<8x128xf32>
    %420 = arith.mulf %419, %99 : vector<8x128xf32>
    %421 = arith.addf %417, %420 : vector<8x128xf32>
    %c98 = arith.constant 98 : index
    %422 = memref.load %arg1[%c98] : memref<256xf32, #tpu.memory_space<smem>>
    %423 = vector.broadcast %422 : f32 to vector<8x128xf32>
    %424 = arith.mulf %423, %111 : vector<8x128xf32>
    %425 = arith.addf %421, %424 : vector<8x128xf32>
    %c99 = arith.constant 99 : index
    %426 = memref.load %arg1[%c99] : memref<256xf32, #tpu.memory_space<smem>>
    %427 = vector.broadcast %426 : f32 to vector<8x128xf32>
    %428 = arith.mulf %427, %123 : vector<8x128xf32>
    %429 = arith.addf %425, %428 : vector<8x128xf32>
    %cst_21 = arith.constant 0.000000e+00 : f32
    %430 = vector.broadcast %cst_21 : f32 to vector<8x128xf32>
    %431 = arith.maximumf %429, %430 : vector<8x128xf32>
    %c137 = arith.constant 137 : index
    %432 = memref.load %arg1[%c137] : memref<256xf32, #tpu.memory_space<smem>>
    %c100 = arith.constant 100 : index
    %433 = memref.load %arg1[%c100] : memref<256xf32, #tpu.memory_space<smem>>
    %434 = vector.broadcast %433 : f32 to vector<8x128xf32>
    %435 = arith.mulf %434, %15 : vector<8x128xf32>
    %436 = vector.broadcast %432 : f32 to vector<8x128xf32>
    %437 = arith.addf %436, %435 : vector<8x128xf32>
    %c101 = arith.constant 101 : index
    %438 = memref.load %arg1[%c101] : memref<256xf32, #tpu.memory_space<smem>>
    %439 = vector.broadcast %438 : f32 to vector<8x128xf32>
    %440 = arith.mulf %439, %27 : vector<8x128xf32>
    %441 = arith.addf %437, %440 : vector<8x128xf32>
    %c102 = arith.constant 102 : index
    %442 = memref.load %arg1[%c102] : memref<256xf32, #tpu.memory_space<smem>>
    %443 = vector.broadcast %442 : f32 to vector<8x128xf32>
    %444 = arith.mulf %443, %39 : vector<8x128xf32>
    %445 = arith.addf %441, %444 : vector<8x128xf32>
    %c103 = arith.constant 103 : index
    %446 = memref.load %arg1[%c103] : memref<256xf32, #tpu.memory_space<smem>>
    %447 = vector.broadcast %446 : f32 to vector<8x128xf32>
    %448 = arith.mulf %447, %51 : vector<8x128xf32>
    %449 = arith.addf %445, %448 : vector<8x128xf32>
    %c104 = arith.constant 104 : index
    %450 = memref.load %arg1[%c104] : memref<256xf32, #tpu.memory_space<smem>>
    %451 = vector.broadcast %450 : f32 to vector<8x128xf32>
    %452 = arith.mulf %451, %63 : vector<8x128xf32>
    %453 = arith.addf %449, %452 : vector<8x128xf32>
    %c105 = arith.constant 105 : index
    %454 = memref.load %arg1[%c105] : memref<256xf32, #tpu.memory_space<smem>>
    %455 = vector.broadcast %454 : f32 to vector<8x128xf32>
    %456 = arith.mulf %455, %75 : vector<8x128xf32>
    %457 = arith.addf %453, %456 : vector<8x128xf32>
    %c106 = arith.constant 106 : index
    %458 = memref.load %arg1[%c106] : memref<256xf32, #tpu.memory_space<smem>>
    %459 = vector.broadcast %458 : f32 to vector<8x128xf32>
    %460 = arith.mulf %459, %87 : vector<8x128xf32>
    %461 = arith.addf %457, %460 : vector<8x128xf32>
    %c107 = arith.constant 107 : index
    %462 = memref.load %arg1[%c107] : memref<256xf32, #tpu.memory_space<smem>>
    %463 = vector.broadcast %462 : f32 to vector<8x128xf32>
    %464 = arith.mulf %463, %99 : vector<8x128xf32>
    %465 = arith.addf %461, %464 : vector<8x128xf32>
    %c108 = arith.constant 108 : index
    %466 = memref.load %arg1[%c108] : memref<256xf32, #tpu.memory_space<smem>>
    %467 = vector.broadcast %466 : f32 to vector<8x128xf32>
    %468 = arith.mulf %467, %111 : vector<8x128xf32>
    %469 = arith.addf %465, %468 : vector<8x128xf32>
    %c109 = arith.constant 109 : index
    %470 = memref.load %arg1[%c109] : memref<256xf32, #tpu.memory_space<smem>>
    %471 = vector.broadcast %470 : f32 to vector<8x128xf32>
    %472 = arith.mulf %471, %123 : vector<8x128xf32>
    %473 = arith.addf %469, %472 : vector<8x128xf32>
    %cst_22 = arith.constant 0.000000e+00 : f32
    %474 = vector.broadcast %cst_22 : f32 to vector<8x128xf32>
    %475 = arith.maximumf %473, %474 : vector<8x128xf32>
    %c138 = arith.constant 138 : index
    %476 = memref.load %arg1[%c138] : memref<256xf32, #tpu.memory_space<smem>>
    %c110 = arith.constant 110 : index
    %477 = memref.load %arg1[%c110] : memref<256xf32, #tpu.memory_space<smem>>
    %478 = vector.broadcast %477 : f32 to vector<8x128xf32>
    %479 = arith.mulf %478, %15 : vector<8x128xf32>
    %480 = vector.broadcast %476 : f32 to vector<8x128xf32>
    %481 = arith.addf %480, %479 : vector<8x128xf32>
    %c111 = arith.constant 111 : index
    %482 = memref.load %arg1[%c111] : memref<256xf32, #tpu.memory_space<smem>>
    %483 = vector.broadcast %482 : f32 to vector<8x128xf32>
    %484 = arith.mulf %483, %27 : vector<8x128xf32>
    %485 = arith.addf %481, %484 : vector<8x128xf32>
    %c112 = arith.constant 112 : index
    %486 = memref.load %arg1[%c112] : memref<256xf32, #tpu.memory_space<smem>>
    %487 = vector.broadcast %486 : f32 to vector<8x128xf32>
    %488 = arith.mulf %487, %39 : vector<8x128xf32>
    %489 = arith.addf %485, %488 : vector<8x128xf32>
    %c113 = arith.constant 113 : index
    %490 = memref.load %arg1[%c113] : memref<256xf32, #tpu.memory_space<smem>>
    %491 = vector.broadcast %490 : f32 to vector<8x128xf32>
    %492 = arith.mulf %491, %51 : vector<8x128xf32>
    %493 = arith.addf %489, %492 : vector<8x128xf32>
    %c114 = arith.constant 114 : index
    %494 = memref.load %arg1[%c114] : memref<256xf32, #tpu.memory_space<smem>>
    %495 = vector.broadcast %494 : f32 to vector<8x128xf32>
    %496 = arith.mulf %495, %63 : vector<8x128xf32>
    %497 = arith.addf %493, %496 : vector<8x128xf32>
    %c115 = arith.constant 115 : index
    %498 = memref.load %arg1[%c115] : memref<256xf32, #tpu.memory_space<smem>>
    %499 = vector.broadcast %498 : f32 to vector<8x128xf32>
    %500 = arith.mulf %499, %75 : vector<8x128xf32>
    %501 = arith.addf %497, %500 : vector<8x128xf32>
    %c116 = arith.constant 116 : index
    %502 = memref.load %arg1[%c116] : memref<256xf32, #tpu.memory_space<smem>>
    %503 = vector.broadcast %502 : f32 to vector<8x128xf32>
    %504 = arith.mulf %503, %87 : vector<8x128xf32>
    %505 = arith.addf %501, %504 : vector<8x128xf32>
    %c117 = arith.constant 117 : index
    %506 = memref.load %arg1[%c117] : memref<256xf32, #tpu.memory_space<smem>>
    %507 = vector.broadcast %506 : f32 to vector<8x128xf32>
    %508 = arith.mulf %507, %99 : vector<8x128xf32>
    %509 = arith.addf %505, %508 : vector<8x128xf32>
    %c118 = arith.constant 118 : index
    %510 = memref.load %arg1[%c118] : memref<256xf32, #tpu.memory_space<smem>>
    %511 = vector.broadcast %510 : f32 to vector<8x128xf32>
    %512 = arith.mulf %511, %111 : vector<8x128xf32>
    %513 = arith.addf %509, %512 : vector<8x128xf32>
    %c119 = arith.constant 119 : index
    %514 = memref.load %arg1[%c119] : memref<256xf32, #tpu.memory_space<smem>>
    %515 = vector.broadcast %514 : f32 to vector<8x128xf32>
    %516 = arith.mulf %515, %123 : vector<8x128xf32>
    %517 = arith.addf %513, %516 : vector<8x128xf32>
    %cst_23 = arith.constant 0.000000e+00 : f32
    %518 = vector.broadcast %cst_23 : f32 to vector<8x128xf32>
    %519 = arith.maximumf %517, %518 : vector<8x128xf32>
    %c139 = arith.constant 139 : index
    %520 = memref.load %arg1[%c139] : memref<256xf32, #tpu.memory_space<smem>>
    %c120 = arith.constant 120 : index
    %521 = memref.load %arg1[%c120] : memref<256xf32, #tpu.memory_space<smem>>
    %522 = vector.broadcast %521 : f32 to vector<8x128xf32>
    %523 = arith.mulf %522, %15 : vector<8x128xf32>
    %524 = vector.broadcast %520 : f32 to vector<8x128xf32>
    %525 = arith.addf %524, %523 : vector<8x128xf32>
    %c121 = arith.constant 121 : index
    %526 = memref.load %arg1[%c121] : memref<256xf32, #tpu.memory_space<smem>>
    %527 = vector.broadcast %526 : f32 to vector<8x128xf32>
    %528 = arith.mulf %527, %27 : vector<8x128xf32>
    %529 = arith.addf %525, %528 : vector<8x128xf32>
    %c122 = arith.constant 122 : index
    %530 = memref.load %arg1[%c122] : memref<256xf32, #tpu.memory_space<smem>>
    %531 = vector.broadcast %530 : f32 to vector<8x128xf32>
    %532 = arith.mulf %531, %39 : vector<8x128xf32>
    %533 = arith.addf %529, %532 : vector<8x128xf32>
    %c123 = arith.constant 123 : index
    %534 = memref.load %arg1[%c123] : memref<256xf32, #tpu.memory_space<smem>>
    %535 = vector.broadcast %534 : f32 to vector<8x128xf32>
    %536 = arith.mulf %535, %51 : vector<8x128xf32>
    %537 = arith.addf %533, %536 : vector<8x128xf32>
    %c124 = arith.constant 124 : index
    %538 = memref.load %arg1[%c124] : memref<256xf32, #tpu.memory_space<smem>>
    %539 = vector.broadcast %538 : f32 to vector<8x128xf32>
    %540 = arith.mulf %539, %63 : vector<8x128xf32>
    %541 = arith.addf %537, %540 : vector<8x128xf32>
    %c125 = arith.constant 125 : index
    %542 = memref.load %arg1[%c125] : memref<256xf32, #tpu.memory_space<smem>>
    %543 = vector.broadcast %542 : f32 to vector<8x128xf32>
    %544 = arith.mulf %543, %75 : vector<8x128xf32>
    %545 = arith.addf %541, %544 : vector<8x128xf32>
    %c126 = arith.constant 126 : index
    %546 = memref.load %arg1[%c126] : memref<256xf32, #tpu.memory_space<smem>>
    %547 = vector.broadcast %546 : f32 to vector<8x128xf32>
    %548 = arith.mulf %547, %87 : vector<8x128xf32>
    %549 = arith.addf %545, %548 : vector<8x128xf32>
    %c127 = arith.constant 127 : index
    %550 = memref.load %arg1[%c127] : memref<256xf32, #tpu.memory_space<smem>>
    %551 = vector.broadcast %550 : f32 to vector<8x128xf32>
    %552 = arith.mulf %551, %99 : vector<8x128xf32>
    %553 = arith.addf %549, %552 : vector<8x128xf32>
    %c128 = arith.constant 128 : index
    %554 = memref.load %arg1[%c128] : memref<256xf32, #tpu.memory_space<smem>>
    %555 = vector.broadcast %554 : f32 to vector<8x128xf32>
    %556 = arith.mulf %555, %111 : vector<8x128xf32>
    %557 = arith.addf %553, %556 : vector<8x128xf32>
    %c129 = arith.constant 129 : index
    %558 = memref.load %arg1[%c129] : memref<256xf32, #tpu.memory_space<smem>>
    %559 = vector.broadcast %558 : f32 to vector<8x128xf32>
    %560 = arith.mulf %559, %123 : vector<8x128xf32>
    %561 = arith.addf %557, %560 : vector<8x128xf32>
    %cst_24 = arith.constant 0.000000e+00 : f32
    %562 = vector.broadcast %cst_24 : f32 to vector<8x128xf32>
    %563 = arith.maximumf %561, %562 : vector<8x128xf32>
    %c150 = arith.constant 150 : index
    %564 = memref.load %arg1[%c150] : memref<256xf32, #tpu.memory_space<smem>>
    %c140 = arith.constant 140 : index
    %565 = memref.load %arg1[%c140] : memref<256xf32, #tpu.memory_space<smem>>
    %566 = vector.broadcast %565 : f32 to vector<8x128xf32>
    %567 = arith.mulf %566, %167 : vector<8x128xf32>
    %568 = vector.broadcast %564 : f32 to vector<8x128xf32>
    %569 = arith.addf %568, %567 : vector<8x128xf32>
    %c141 = arith.constant 141 : index
    %570 = memref.load %arg1[%c141] : memref<256xf32, #tpu.memory_space<smem>>
    %571 = vector.broadcast %570 : f32 to vector<8x128xf32>
    %572 = arith.mulf %571, %211 : vector<8x128xf32>
    %573 = arith.addf %569, %572 : vector<8x128xf32>
    %c142 = arith.constant 142 : index
    %574 = memref.load %arg1[%c142] : memref<256xf32, #tpu.memory_space<smem>>
    %575 = vector.broadcast %574 : f32 to vector<8x128xf32>
    %576 = arith.mulf %575, %255 : vector<8x128xf32>
    %577 = arith.addf %573, %576 : vector<8x128xf32>
    %c143 = arith.constant 143 : index
    %578 = memref.load %arg1[%c143] : memref<256xf32, #tpu.memory_space<smem>>
    %579 = vector.broadcast %578 : f32 to vector<8x128xf32>
    %580 = arith.mulf %579, %299 : vector<8x128xf32>
    %581 = arith.addf %577, %580 : vector<8x128xf32>
    %c144 = arith.constant 144 : index
    %582 = memref.load %arg1[%c144] : memref<256xf32, #tpu.memory_space<smem>>
    %583 = vector.broadcast %582 : f32 to vector<8x128xf32>
    %584 = arith.mulf %583, %343 : vector<8x128xf32>
    %585 = arith.addf %581, %584 : vector<8x128xf32>
    %c145 = arith.constant 145 : index
    %586 = memref.load %arg1[%c145] : memref<256xf32, #tpu.memory_space<smem>>
    %587 = vector.broadcast %586 : f32 to vector<8x128xf32>
    %588 = arith.mulf %587, %387 : vector<8x128xf32>
    %589 = arith.addf %585, %588 : vector<8x128xf32>
    %c146 = arith.constant 146 : index
    %590 = memref.load %arg1[%c146] : memref<256xf32, #tpu.memory_space<smem>>
    %591 = vector.broadcast %590 : f32 to vector<8x128xf32>
    %592 = arith.mulf %591, %431 : vector<8x128xf32>
    %593 = arith.addf %589, %592 : vector<8x128xf32>
    %c147 = arith.constant 147 : index
    %594 = memref.load %arg1[%c147] : memref<256xf32, #tpu.memory_space<smem>>
    %595 = vector.broadcast %594 : f32 to vector<8x128xf32>
    %596 = arith.mulf %595, %475 : vector<8x128xf32>
    %597 = arith.addf %593, %596 : vector<8x128xf32>
    %c148 = arith.constant 148 : index
    %598 = memref.load %arg1[%c148] : memref<256xf32, #tpu.memory_space<smem>>
    %599 = vector.broadcast %598 : f32 to vector<8x128xf32>
    %600 = arith.mulf %599, %519 : vector<8x128xf32>
    %601 = arith.addf %597, %600 : vector<8x128xf32>
    %c149 = arith.constant 149 : index
    %602 = memref.load %arg1[%c149] : memref<256xf32, #tpu.memory_space<smem>>
    %603 = vector.broadcast %602 : f32 to vector<8x128xf32>
    %604 = arith.mulf %603, %563 : vector<8x128xf32>
    %605 = arith.addf %601, %604 : vector<8x128xf32>
    %c0_25 = arith.constant 0 : index
    %c0_26 = arith.constant 0 : index
    %606 = vector.load %arg3[%c0_25, %c0_26] : memref<8x128xf32, #tpu.memory_space<vmem>>, vector<8x128xf32>
    tpu.vector_store %arg3[%c0_25, %c0_26], %605 {strides = array<i32>} : memref<8x128xf32, #tpu.memory_space<vmem>>, vector<8x128xf32>,
    return
  }
  func.func @transform_0(%arg0: i32) -> i32 {
    %c0_i32 = arith.constant 0 : i32
    %c0_i32_0 = arith.constant 0 : i32
    return %c0_i32 : i32
  }
  func.func @transform_1(%arg0: i32) -> (i32, i32, i32) {
    %c0_i32 = arith.constant 0 : i32
    %c0_i32_0 = arith.constant 0 : i32
    %c0_i32_1 = arith.constant 0 : i32
    return %c0_i32, %arg0, %c0_i32_0 : i32, i32, i32
  }
  func.func @transform_2(%arg0: i32) -> (i32, i32) {
    %c0_i32 = arith.constant 0 : i32
    %c0_i32_0 = arith.constant 0 : i32
    return %arg0, %c0_i32 : i32, i32
  }
}

</mosaic_0001>

<llo_original>
// kernel: circle_model_forward.1
$region0: #{circle_model_forward.1}
  #allocation0 [shape = 'u32[]', space=smem, size = 0x4, offset = 0x4, fixed_abs, tag = 'smem constant byte address 0x4 - core index']
  #allocation1 [shape = 'u32[72,128]{1,0:T(1,128)}', space=vmem, size = 0x9000, scoped, tag = 'internal scratch']
  %s0 = inlined_call_operand.vmem [shape: f32[256], index: 0, kind: input, shape index: {}]
  %s1 = inlined_call_operand.vmem [shape: f32[2,8,128], index: 1, kind: input, shape index: {}]
  %s2 = inlined_call_operand.vmem [shape: f32[8,128], index: 2, kind: output, shape index: {}]
  %s3 = sld [smem:[#allocation0]]
  $region22: #{circle_model_forward.1} parent=0
    _
  %s5 = ssub.s32 1, %s3
  %s6 = scalar_select 0, %s5, %s3
  $region1: #{circle_model_forward.1} parent=0
    #allocation2 [shape = 'u8[1024]{0}', space=smem, size = 0x400, scoped, tag = 'input window, operand 0, single buffered']
    #allocation3 [shape = 's32[1]{0}', space=sflag, size = 0x4, scoped, tag = 'scoped memory for circle_model_forward.1']
    %7 = vsyncpa [#allocation3], 0
    // Predicated region
    $region2: #{circle_model_forward.1} parent=1 // pred_check
      _
    $region3: #{circle_model_forward.1} parent=1 // pred_check_branch
      %9 = sbr.rel (0) target = $region5
    $region4: #{circle_model_forward.1} parent=1 // pred_region
      %11 = vsyncadd [#allocation3], 0
      %s13 = sshll.u32 %s0, 4
      %s14 = int_to_ptr.vmem [resolvable:$true] %s13
      %16 = dma.vmem_to_smem %s14, 32, [#allocation2], [#allocation3]
    $region5: #{circle_model_forward.1} parent=1 // pred_fallthru
      _
    // Predicated region
    $region6: #{circle_model_forward.1} parent=1 // pred_check
      _
    $region7: #{circle_model_forward.1} parent=1 // pred_check_branch
      %18 = sbr.rel (0) target = $region9
    $region8: #{circle_model_forward.1} parent=1 // pred_region
      _
    $region9: #{circle_model_forward.1} parent=1 // pred_fallthru
      _
    // Predicated region
    $region10: #{circle_model_forward.1} parent=1 // pred_check
      _
    $region11: #{circle_model_forward.1} parent=1 // pred_check_branch
      %20 = sbr.rel (0) target = $region13
    $region12: #{circle_model_forward.1} parent=1 // pred_region
      %22 = dma.done [#allocation3], 32
    $region13: #{circle_model_forward.1} parent=1 // pred_fallthru
      _
    %23 = sfence
    %v24 = vld [vmem:[%s1] sm:$0xff]
    %s25 = scalar_lea.vmem %s1, 8
    %v26 = vld [vmem:[%s25] sm:$0xff]
    %s27 = sld [smem:[#allocation2 + $0x14]]
    %s28 = sld [smem:[#allocation2]]
    %v29 = vstv %s28
    %v30 = vmul.f32 %v29, %v24
    %v31 = vstv %s27
    %v32 = vadd.f32 %v31, %v30
    %s33 = sld [smem:[#allocation2 + $0x1]]
    %v34 = vstv %s33
    %v35 = vmul.f32 %v34, %v26
    %v36 = vadd.f32 %v32, %v35
    %v37 = vmax.f32 %v36, 0.0
    %s38 = sld [smem:[#allocation2 + $0x15]]
    %s39 = sld [smem:[#allocation2 + $0x2]]
    %v40 = vstv %s39
    %v41 = vmul.f32 %v40, %v24
    %v42 = vstv %s38
    %v43 = vadd.f32 %v42, %v41
    %s44 = sld [smem:[#allocation2 + $0x3]]
    %v45 = vstv %s44
    %v46 = vmul.f32 %v45, %v26
    %v47 = vadd.f32 %v43, %v46
    %v48 = vmax.f32 %v47, 0.0
    %s49 = sld [smem:[#allocation2 + $0x16]]
    %s50 = sld [smem:[#allocation2 + $0x4]]
    %v51 = vstv %s50
    %v52 = vmul.f32 %v51, %v24
    %v53 = vstv %s49
    %v54 = vadd.f32 %v53, %v52
    %s55 = sld [smem:[#allocation2 + $0x5]]
    %v56 = vstv %s55
    %v57 = vmul.f32 %v56, %v26
    %v58 = vadd.f32 %v54, %v57
    %v59 = vmax.f32 %v58, 0.0
    %s60 = sld [smem:[#allocation2 + $0x17]]
    %s61 = sld [smem:[#allocation2 + $0x6]]
    %v62 = vstv %s61
    %v63 = vmul.f32 %v62, %v24
    %v64 = vstv %s60
    %v65 = vadd.f32 %v64, %v63
    %s66 = sld [smem:[#allocation2 + $0x7]]
    %v67 = vstv %s66
    %v68 = vmul.f32 %v67, %v26
    %v69 = vadd.f32 %v65, %v68
    %v70 = vmax.f32 %v69, 0.0
    %s71 = sld [smem:[#allocation2 + $0x18]]
    %s72 = sld [smem:[#allocation2 + $0x8]]
    %v73 = vstv %s72
    %v74 = vmul.f32 %v73, %v24
    %v75 = vstv %s71
    %v76 = vadd.f32 %v75, %v74
    %s77 = sld [smem:[#allocation2 + $0x9]]
    %v78 = vstv %s77
    %v79 = vmul.f32 %v78, %v26
    %v80 = vadd.f32 %v76, %v79
    %v81 = vmax.f32 %v80, 0.0
    %s82 = sld [smem:[#allocation2 + $0x19]]
    %s83 = sld [smem:[#allocation2 + $0xa]]
    %v84 = vstv %s83
    %v85 = vmul.f32 %v84, %v24
    %v86 = vstv %s82
    %v87 = vadd.f32 %v86, %v85
    %s88 = sld [smem:[#allocation2 + $0xb]]
    %v89 = vstv %s88
    %v90 = vmul.f32 %v89, %v26
    %v91 = vadd.f32 %v87, %v90
    %v92 = vmax.f32 %v91, 0.0
    %s93 = sld [smem:[#allocation2 + $0x1a]]
    %s94 = sld [smem:[#allocation2 + $0xc]]
    %v95 = vstv %s94
    %v96 = vmul.f32 %v95, %v24
    %v97 = vstv %s93
    %v98 = vadd.f32 %v97, %v96
    %s99 = sld [smem:[#allocation2 + $0xd]]
    %v100 = vstv %s99
    %v101 = vmul.f32 %v100, %v26
    %v102 = vadd.f32 %v98, %v101
    %v103 = vmax.f32 %v102, 0.0
    %s104 = sld [smem:[#allocation2 + $0x1b]]
    %s105 = sld [smem:[#allocation2 + $0xe]]
    %v106 = vstv %s105
    %v107 = vmul.f32 %v106, %v24
    %v108 = vstv %s104
    %v109 = vadd.f32 %v108, %v107
    %s110 = sld [smem:[#allocation2 + $0xf]]
    %v111 = vstv %s110
    %v112 = vmul.f32 %v111, %v26
    %v113 = vadd.f32 %v109, %v112
    %v114 = vmax.f32 %v113, 0.0
    %s115 = sld [smem:[#allocation2 + $0x1c]]
    %s116 = sld [smem:[#allocation2 + $0x10]]
    %v117 = vstv %s116
    %v118 = vmul.f32 %v117, %v24
    %v119 = vstv %s115
    %v120 = vadd.f32 %v119, %v118
    %s121 = sld [smem:[#allocation2 + $0x11]]
    %v122 = vstv %s121
    %v123 = vmul.f32 %v122, %v26
    %v124 = vadd.f32 %v120, %v123
    %v125 = vmax.f32 %v124, 0.0
    %s126 = sld [smem:[#allocation2 + $0x1d]]
    %s127 = sld [smem:[#allocation2 + $0x12]]
    %v128 = vstv %s127
    %v129 = vmul.f32 %v128, %v24
    %v130 = vstv %s126
    %v131 = vadd.f32 %v130, %v129
    %s132 = sld [smem:[#allocation2 + $0x13]]
    %v133 = vstv %s132
    %v134 = vmul.f32 %v133, %v26
    %v135 = vadd.f32 %v131, %v134
    %v136 = vmax.f32 %v135, 0.0
    %s137 = sld [smem:[#allocation2 + $0x82]]
    %s138 = sld [smem:[#allocation2 + $0x1e]]
    %v139 = vstv %s138
    %v140 = vmul.f32 %v139, %v37
    %v141 = vstv %s137
    %v142 = vadd.f32 %v141, %v140
    %s143 = sld [smem:[#allocation2 + $0x1f]]
    %v144 = vstv %s143
    %v145 = vmul.f32 %v144, %v48
    %v146 = vadd.f32 %v142, %v145
    %s147 = sld [smem:[#allocation2 + $0x20]]
    %v148 = vstv %s147
    %v149 = vmul.f32 %v148, %v59
    %v150 = vadd.f32 %v146, %v149
    %s151 = sld [smem:[#allocation2 + $0x21]]
    %v152 = vstv %s151
    %v153 = vmul.f32 %v152, %v70
    %v154 = vadd.f32 %v150, %v153
    %s155 = sld [smem:[#allocation2 + $0x22]]
    %v156 = vstv %s155
    %v157 = vmul.f32 %v156, %v81
    %v158 = vadd.f32 %v154, %v157
    %s159 = sld [smem:[#allocation2 + $0x23]]
    %v160 = vstv %s159
    %v161 = vmul.f32 %v160, %v92
    %v162 = vadd.f32 %v158, %v161
    %s163 = sld [smem:[#allocation2 + $0x24]]
    %v164 = vstv %s163
    %v165 = vmul.f32 %v164, %v103
    %v166 = vadd.f32 %v162, %v165
    %s167 = sld [smem:[#allocation2 + $0x25]]
    %v168 = vstv %s167
    %v169 = vmul.f32 %v168, %v114
    %v170 = vadd.f32 %v166, %v169
    %s171 = sld [smem:[#allocation2 + $0x26]]
    %v172 = vstv %s171
    %v173 = vmul.f32 %v172, %v125
    %v174 = vadd.f32 %v170, %v173
    %s175 = sld [smem:[#allocation2 + $0x27]]
    %v176 = vstv %s175
    %v177 = vmul.f32 %v176, %v136
    %v178 = vadd.f32 %v174, %v177
    %v179 = vmax.f32 %v178, 0.0
    %s180 = sld [smem:[#allocation2 + $0x83]]
    %s181 = sld [smem:[#allocation2 + $0x28]]
    %v182 = vstv %s181
    %v183 = vmul.f32 %v182, %v37
    %v184 = vstv %s180
    %v185 = vadd.f32 %v184, %v183
    %s186 = sld [smem:[#allocation2 + $0x29]]
    %v187 = vstv %s186
    %v188 = vmul.f32 %v187, %v48
    %v189 = vadd.f32 %v185, %v188
    %s190 = sld [smem:[#allocation2 + $0x2a]]
    %v191 = vstv %s190
    %v192 = vmul.f32 %v191, %v59
    %v193 = vadd.f32 %v189, %v192
    %s194 = sld [smem:[#allocation2 + $0x2b]]
    %v195 = vstv %s194
    %v196 = vmul.f32 %v195, %v70
    %v197 = vadd.f32 %v193, %v196
    %s198 = sld [smem:[#allocation2 + $0x2c]]
    %v199 = vstv %s198
    %v200 = vmul.f32 %v199, %v81
    %v201 = vadd.f32 %v197, %v200
    %s202 = sld [smem:[#allocation2 + $0x2d]]
    %v203 = vstv %s202
    %v204 = vmul.f32 %v203, %v92
    %v205 = vadd.f32 %v201, %v204
    %s206 = sld [smem:[#allocation2 + $0x2e]]
    %v207 = vstv %s206
    %v208 = vmul.f32 %v207, %v103
    %v209 = vadd.f32 %v205, %v208
    %s210 = sld [smem:[#allocation2 + $0x2f]]
    %v211 = vstv %s210
    %v212 = vmul.f32 %v211, %v114
    %v213 = vadd.f32 %v209, %v212
    %s214 = sld [smem:[#allocation2 + $0x30]]
    %v215 = vstv %s214
    %v216 = vmul.f32 %v215, %v125
    %v217 = vadd.f32 %v213, %v216
    %s218 = sld [smem:[#allocation2 + $0x31]]
    %v219 = vstv %s218
    %v220 = vmul.f32 %v219, %v136
    %v221 = vadd.f32 %v217, %v220
    %v222 = vmax.f32 %v221, 0.0
    %s223 = sld [smem:[#allocation2 + $0x84]]
    %s224 = sld [smem:[#allocation2 + $0x32]]
    %v225 = vstv %s224
    %v226 = vmul.f32 %v225, %v37
    %v227 = vstv %s223
    %v228 = vadd.f32 %v227, %v226
    %s229 = sld [smem:[#allocation2 + $0x33]]
    %v230 = vstv %s229
    %v231 = vmul.f32 %v230, %v48
    %v232 = vadd.f32 %v228, %v231
    %s233 = sld [smem:[#allocation2 + $0x34]]
    %v234 = vstv %s233
    %v235 = vmul.f32 %v234, %v59
    %v236 = vadd.f32 %v232, %v235
    %s237 = sld [smem:[#allocation2 + $0x35]]
    %v238 = vstv %s237
    %v239 = vmul.f32 %v238, %v70
    %v240 = vadd.f32 %v236, %v239
    %s241 = sld [smem:[#allocation2 + $0x36]]
    %v242 = vstv %s241
    %v243 = vmul.f32 %v242, %v81
    %v244 = vadd.f32 %v240, %v243
    %s245 = sld [smem:[#allocation2 + $0x37]]
    %v246 = vstv %s245
    %v247 = vmul.f32 %v246, %v92
    %v248 = vadd.f32 %v244, %v247
    %s249 = sld [smem:[#allocation2 + $0x38]]
    %v250 = vstv %s249
    %v251 = vmul.f32 %v250, %v103
    %v252 = vadd.f32 %v248, %v251
    %s253 = sld [smem:[#allocation2 + $0x39]]
    %v254 = vstv %s253
    %v255 = vmul.f32 %v254, %v114
    %v256 = vadd.f32 %v252, %v255
    %s257 = sld [smem:[#allocation2 + $0x3a]]
    %v258 = vstv %s257
    %v259 = vmul.f32 %v258, %v125
    %v260 = vadd.f32 %v256, %v259
    %s261 = sld [smem:[#allocation2 + $0x3b]]
    %v262 = vstv %s261
    %v263 = vmul.f32 %v262, %v136
    %v264 = vadd.f32 %v260, %v263
    %v265 = vmax.f32 %v264, 0.0
    %s266 = sld [smem:[#allocation2 + $0x85]]
    %s267 = sld [smem:[#allocation2 + $0x3c]]
    %v268 = vstv %s267
    %v269 = vmul.f32 %v268, %v37
    %v270 = vstv %s266
    %v271 = vadd.f32 %v270, %v269
    %s272 = sld [smem:[#allocation2 + $0x3d]]
    %v273 = vstv %s272
    %v274 = vmul.f32 %v273, %v48
    %v275 = vadd.f32 %v271, %v274
    %s276 = sld [smem:[#allocation2 + $0x3e]]
    %v277 = vstv %s276
    %v278 = vmul.f32 %v277, %v59
    %v279 = vadd.f32 %v275, %v278
    %s280 = sld [smem:[#allocation2 + $0x3f]]
    %v281 = vstv %s280
    %v282 = vmul.f32 %v281, %v70
    %v283 = vadd.f32 %v279, %v282
    %s284 = sld [smem:[#allocation2 + $0x40]]
    %v285 = vstv %s284
    %v286 = vmul.f32 %v285, %v81
    %v287 = vadd.f32 %v283, %v286
    %s288 = sld [smem:[#allocation2 + $0x41]]
    %v289 = vstv %s288
    %v290 = vmul.f32 %v289, %v92
    %v291 = vadd.f32 %v287, %v290
    %s292 = sld [smem:[#allocation2 + $0x42]]
    %v293 = vstv %s292
    %v294 = vmul.f32 %v293, %v103
    %v295 = vadd.f32 %v291, %v294
    %s296 = sld [smem:[#allocation2 + $0x43]]
    %v297 = vstv %s296
    %v298 = vmul.f32 %v297, %v114
    %v299 = vadd.f32 %v295, %v298
    %s300 = sld [smem:[#allocation2 + $0x44]]
    %v301 = vstv %s300
    %v302 = vmul.f32 %v301, %v125
    %v303 = vadd.f32 %v299, %v302
    %s304 = sld [smem:[#allocation2 + $0x45]]
    %v305 = vstv %s304
    %v306 = vmul.f32 %v305, %v136
    %v307 = vadd.f32 %v303, %v306
    %v308 = vmax.f32 %v307, 0.0
    %s309 = sld [smem:[#allocation2 + $0x86]]
    %s310 = sld [smem:[#allocation2 + $0x46]]
    %v311 = vstv %s310
    %v312 = vmul.f32 %v311, %v37
    %v313 = vstv %s309
    %v314 = vadd.f32 %v313, %v312
    %s315 = sld [smem:[#allocation2 + $0x47]]
    %v316 = vstv %s315
    %v317 = vmul.f32 %v316, %v48
    %v318 = vadd.f32 %v314, %v317
    %s319 = sld [smem:[#allocation2 + $0x48]]
    %v320 = vstv %s319
    %v321 = vmul.f32 %v320, %v59
    %v322 = vadd.f32 %v318, %v321
    %s323 = sld [smem:[#allocation2 + $0x49]]
    %v324 = vstv %s323
    %v325 = vmul.f32 %v324, %v70
    %v326 = vadd.f32 %v322, %v325
    %s327 = sld [smem:[#allocation2 + $0x4a]]
    %v328 = vstv %s327
    %v329 = vmul.f32 %v328, %v81
    %v330 = vadd.f32 %v326, %v329
    %s331 = sld [smem:[#allocation2 + $0x4b]]
    %v332 = vstv %s331
    %v333 = vmul.f32 %v332, %v92
    %v334 = vadd.f32 %v330, %v333
    %s335 = sld [smem:[#allocation2 + $0x4c]]
    %v336 = vstv %s335
    %v337 = vmul.f32 %v336, %v103
    %v338 = vadd.f32 %v334, %v337
    %s339 = sld [smem:[#allocation2 + $0x4d]]
    %v340 = vstv %s339
    %v341 = vmul.f32 %v340, %v114
    %v342 = vadd.f32 %v338, %v341
    %s343 = sld [smem:[#allocation2 + $0x4e]]
    %v344 = vstv %s343
    %v345 = vmul.f32 %v344, %v125
    %v346 = vadd.f32 %v342, %v345
    %s347 = sld [smem:[#allocation2 + $0x4f]]
    %v348 = vstv %s347
    %v349 = vmul.f32 %v348, %v136
    %v350 = vadd.f32 %v346, %v349
    %v351 = vmax.f32 %v350, 0.0
    %s352 = sld [smem:[#allocation2 + $0x87]]
    %s353 = sld [smem:[#allocation2 + $0x50]]
    %v354 = vstv %s353
    %v355 = vmul.f32 %v354, %v37
    %v356 = vstv %s352
    %v357 = vadd.f32 %v356, %v355
    %s358 = sld [smem:[#allocation2 + $0x51]]
    %v359 = vstv %s358
    %v360 = vmul.f32 %v359, %v48
    %v361 = vadd.f32 %v357, %v360
    %s362 = sld [smem:[#allocation2 + $0x52]]
    %v363 = vstv %s362
    %v364 = vmul.f32 %v363, %v59
    %v365 = vadd.f32 %v361, %v364
    %s366 = sld [smem:[#allocation2 + $0x53]]
    %v367 = vstv %s366
    %v368 = vmul.f32 %v367, %v70
    %v369 = vadd.f32 %v365, %v368
    %s370 = sld [smem:[#allocation2 + $0x54]]
    %v371 = vstv %s370
    %v372 = vmul.f32 %v371, %v81
    %v373 = vadd.f32 %v369, %v372
    %s374 = sld [smem:[#allocation2 + $0x55]]
    %v375 = vstv %s374
    %v376 = vmul.f32 %v375, %v92
    %v377 = vadd.f32 %v373, %v376
    %s378 = sld [smem:[#allocation2 + $0x56]]
    %v379 = vstv %s378
    %v380 = vmul.f32 %v379, %v103
    %v381 = vadd.f32 %v377, %v380
    %s382 = sld [smem:[#allocation2 + $0x57]]
    %v383 = vstv %s382
    %v384 = vmul.f32 %v383, %v114
    %v385 = vadd.f32 %v381, %v384
    %s386 = sld [smem:[#allocation2 + $0x58]]
    %v387 = vstv %s386
    %v388 = vmul.f32 %v387, %v125
    %v389 = vadd.f32 %v385, %v388
    %s390 = sld [smem:[#allocation2 + $0x59]]
    %v391 = vstv %s390
    %v392 = vmul.f32 %v391, %v136
    %v393 = vadd.f32 %v389, %v392
    %v394 = vmax.f32 %v393, 0.0
    %s395 = sld [smem:[#allocation2 + $0x88]]
    %s396 = sld [smem:[#allocation2 + $0x5a]]
    %v397 = vstv %s396
    %v398 = vmul.f32 %v397, %v37
    %v399 = vstv %s395
    %v400 = vadd.f32 %v399, %v398
    %s401 = sld [smem:[#allocation2 + $0x5b]]
    %v402 = vstv %s401
    %v403 = vmul.f32 %v402, %v48
    %v404 = vadd.f32 %v400, %v403
    %s405 = sld [smem:[#allocation2 + $0x5c]]
    %v406 = vstv %s405
    %v407 = vmul.f32 %v406, %v59
    %v408 = vadd.f32 %v404, %v407
    %s409 = sld [smem:[#allocation2 + $0x5d]]
    %v410 = vstv %s409
    %v411 = vmul.f32 %v410, %v70
    %v412 = vadd.f32 %v408, %v411
    %s413 = sld [smem:[#allocation2 + $0x5e]]
    %v414 = vstv %s413
    %v415 = vmul.f32 %v414, %v81
    %v416 = vadd.f32 %v412, %v415
    %s417 = sld [smem:[#allocation2 + $0x5f]]
    %v418 = vstv %s417
    %v419 = vmul.f32 %v418, %v92
    %v420 = vadd.f32 %v416, %v419
    %s421 = sld [smem:[#allocation2 + $0x60]]
    %v422 = vstv %s421
    %v423 = vmul.f32 %v422, %v103
    %v424 = vadd.f32 %v420, %v423
    %s425 = sld [smem:[#allocation2 + $0x61]]
    %v426 = vstv %s425
    %v427 = vmul.f32 %v426, %v114
    %v428 = vadd.f32 %v424, %v427
    %s429 = sld [smem:[#allocation2 + $0x62]]
    %v430 = vstv %s429
    %v431 = vmul.f32 %v430, %v125
    %v432 = vadd.f32 %v428, %v431
    %s433 = sld [smem:[#allocation2 + $0x63]]
    %v434 = vstv %s433
    %v435 = vmul.f32 %v434, %v136
    %v436 = vadd.f32 %v432, %v435
    %v437 = vmax.f32 %v436, 0.0
    %s438 = sld [smem:[#allocation2 + $0x89]]
    %s439 = sld [smem:[#allocation2 + $0x64]]
    %v440 = vstv %s439
    %v441 = vmul.f32 %v440, %v37
    %v442 = vstv %s438
    %v443 = vadd.f32 %v442, %v441
    %s444 = sld [smem:[#allocation2 + $0x65]]
    %v445 = vstv %s444
    %v446 = vmul.f32 %v445, %v48
    %v447 = vadd.f32 %v443, %v446
    %s448 = sld [smem:[#allocation2 + $0x66]]
    %v449 = vstv %s448
    %v450 = vmul.f32 %v449, %v59
    %v451 = vadd.f32 %v447, %v450
    %s452 = sld [smem:[#allocation2 + $0x67]]
    %v453 = vstv %s452
    %v454 = vmul.f32 %v453, %v70
    %v455 = vadd.f32 %v451, %v454
    %s456 = sld [smem:[#allocation2 + $0x68]]
    %v457 = vstv %s456
    %v458 = vmul.f32 %v457, %v81
    %v459 = vadd.f32 %v455, %v458
    %s460 = sld [smem:[#allocation2 + $0x69]]
    %v461 = vstv %s460
    %v462 = vmul.f32 %v461, %v92
    %v463 = vadd.f32 %v459, %v462
    %s464 = sld [smem:[#allocation2 + $0x6a]]
    %v465 = vstv %s464
    %v466 = vmul.f32 %v465, %v103
    %v467 = vadd.f32 %v463, %v466
    %s468 = sld [smem:[#allocation2 + $0x6b]]
    %v469 = vstv %s468
    %v470 = vmul.f32 %v469, %v114
    %v471 = vadd.f32 %v467, %v470
    %s472 = sld [smem:[#allocation2 + $0x6c]]
    %v473 = vstv %s472
    %v474 = vmul.f32 %v473, %v125
    %v475 = vadd.f32 %v471, %v474
    %s476 = sld [smem:[#allocation2 + $0x6d]]
    %v477 = vstv %s476
    %v478 = vmul.f32 %v477, %v136
    %v479 = vadd.f32 %v475, %v478
    %v480 = vmax.f32 %v479, 0.0
    %s481 = sld [smem:[#allocation2 + $0x8a]]
    %s482 = sld [smem:[#allocation2 + $0x6e]]
    %v483 = vstv %s482
    %v484 = vmul.f32 %v483, %v37
    %v485 = vstv %s481
    %v486 = vadd.f32 %v485, %v484
    %s487 = sld [smem:[#allocation2 + $0x6f]]
    %v488 = vstv %s487
    %v489 = vmul.f32 %v488, %v48
    %v490 = vadd.f32 %v486, %v489
    %s491 = sld [smem:[#allocation2 + $0x70]]
    %v492 = vstv %s491
    %v493 = vmul.f32 %v492, %v59
    %v494 = vadd.f32 %v490, %v493
    %s495 = sld [smem:[#allocation2 + $0x71]]
    %v496 = vstv %s495
    %v497 = vmul.f32 %v496, %v70
    %v498 = vadd.f32 %v494, %v497
    %s499 = sld [smem:[#allocation2 + $0x72]]
    %v500 = vstv %s499
    %v501 = vmul.f32 %v500, %v81
    %v502 = vadd.f32 %v498, %v501
    %s503 = sld [smem:[#allocation2 + $0x73]]
    %v504 = vstv %s503
    %v505 = vmul.f32 %v504, %v92
    %v506 = vadd.f32 %v502, %v505
    %s507 = sld [smem:[#allocation2 + $0x74]]
    %v508 = vstv %s507
    %v509 = vmul.f32 %v508, %v103
    %v510 = vadd.f32 %v506, %v509
    %s511 = sld [smem:[#allocation2 + $0x75]]
    %v512 = vstv %s511
    %v513 = vmul.f32 %v512, %v114
    %v514 = vadd.f32 %v510, %v513
    %s515 = sld [smem:[#allocation2 + $0x76]]
    %v516 = vstv %s515
    %v517 = vmul.f32 %v516, %v125
    %v518 = vadd.f32 %v514, %v517
    %s519 = sld [smem:[#allocation2 + $0x77]]
    %v520 = vstv %s519
    %v521 = vmul.f32 %v520, %v136
    %v522 = vadd.f32 %v518, %v521
    %v523 = vmax.f32 %v522, 0.0
    %s524 = sld [smem:[#allocation2 + $0x8b]]
    %s525 = sld [smem:[#allocation2 + $0x78]]
    %v526 = vstv %s525
    %v527 = vmul.f32 %v526, %v37
    %v528 = vstv %s524
    %v529 = vadd.f32 %v528, %v527
    %s530 = sld [smem:[#allocation2 + $0x79]]
    %v531 = vstv %s530
    %v532 = vmul.f32 %v531, %v48
    %v533 = vadd.f32 %v529, %v532
    %s534 = sld [smem:[#allocation2 + $0x7a]]
    %v535 = vstv %s534
    %v536 = vmul.f32 %v535, %v59
    %v537 = vadd.f32 %v533, %v536
    %s538 = sld [smem:[#allocation2 + $0x7b]]
    %v539 = vstv %s538
    %v540 = vmul.f32 %v539, %v70
    %v541 = vadd.f32 %v537, %v540
    %s542 = sld [smem:[#allocation2 + $0x7c]]
    %v543 = vstv %s542
    %v544 = vmul.f32 %v543, %v81
    %v545 = vadd.f32 %v541, %v544
    %s546 = sld [smem:[#allocation2 + $0x7d]]
    %v547 = vstv %s546
    %v548 = vmul.f32 %v547, %v92
    %v549 = vadd.f32 %v545, %v548
    %s550 = sld [smem:[#allocation2 + $0x7e]]
    %v551 = vstv %s550
    %v552 = vmul.f32 %v551, %v103
    %v553 = vadd.f32 %v549, %v552
    %s554 = sld [smem:[#allocation2 + $0x7f]]
    %v555 = vstv %s554
    %v556 = vmul.f32 %v555, %v114
    %v557 = vadd.f32 %v553, %v556
    %s558 = sld [smem:[#allocation2 + $0x80]]
    %v559 = vstv %s558
    %v560 = vmul.f32 %v559, %v125
    %v561 = vadd.f32 %v557, %v560
    %s562 = sld [smem:[#allocation2 + $0x81]]
    %v563 = vstv %s562
    %v564 = vmul.f32 %v563, %v136
    %v565 = vadd.f32 %v561, %v564
    %v566 = vmax.f32 %v565, 0.0
    %s567 = sld [smem:[#allocation2 + $0x96]]
    %s568 = sld [smem:[#allocation2 + $0x8c]]
    %v569 = vstv %s568
    %v570 = vmul.f32 %v569, %v179
    %v571 = vstv %s567
    %v572 = vadd.f32 %v571, %v570
    %s573 = sld [smem:[#allocation2 + $0x8d]]
    %v574 = vstv %s573
    %v575 = vmul.f32 %v574, %v222
    %v576 = vadd.f32 %v572, %v575
    %s577 = sld [smem:[#allocation2 + $0x8e]]
    %v578 = vstv %s577
    %v579 = vmul.f32 %v578, %v265
    %v580 = vadd.f32 %v576, %v579
    %s581 = sld [smem:[#allocation2 + $0x8f]]
    %v582 = vstv %s581
    %v583 = vmul.f32 %v582, %v308
    %v584 = vadd.f32 %v580, %v583
    %s585 = sld [smem:[#allocation2 + $0x90]]
    %v586 = vstv %s585
    %v587 = vmul.f32 %v586, %v351
    %v588 = vadd.f32 %v584, %v587
    %s589 = sld [smem:[#allocation2 + $0x91]]
    %v590 = vstv %s589
    %v591 = vmul.f32 %v590, %v394
    %v592 = vadd.f32 %v588, %v591
    %s593 = sld [smem:[#allocation2 + $0x92]]
    %v594 = vstv %s593
    %v595 = vmul.f32 %v594, %v437
    %v596 = vadd.f32 %v592, %v595
    %s597 = sld [smem:[#allocation2 + $0x93]]
    %v598 = vstv %s597
    %v599 = vmul.f32 %v598, %v480
    %v600 = vadd.f32 %v596, %v599
    %s601 = sld [smem:[#allocation2 + $0x94]]
    %v602 = vstv %s601
    %v603 = vmul.f32 %v602, %v523
    %v604 = vadd.f32 %v600, %v603
    %s605 = sld [smem:[#allocation2 + $0x95]]
    %v606 = vstv %s605
    %v607 = vmul.f32 %v606, %v566
    %v608 = vadd.f32 %v604, %v607
    %609 = vst [vmem:[%s2] sm:$0xff] %v608
    // Predicated region
    $region14: #{circle_model_forward.1} parent=1 // pred_check
      _
    $region15: #{circle_model_forward.1} parent=1 // pred_check_branch
      %611 = sbr.rel (0) target = $region17
    $region16: #{circle_model_forward.1} parent=1 // pred_region
      _
    $region17: #{circle_model_forward.1} parent=1 // pred_fallthru
      _
    // Predicated region
    $region18: #{circle_model_forward.1} parent=1 // pred_check
      _
    $region19: #{circle_model_forward.1} parent=1 // pred_check_branch
      %613 = sbr.rel (0) target = $region21
    $region20: #{circle_model_forward.1} parent=1 // pred_region
      _
    $region21: #{circle_model_forward.1} parent=1 // pred_fallthru
      _
    %614 = vsyncpa [#allocation3], 1

</llo_original>
